<compile_context>
chip_gen: v5e
topology: v5e:2x2
jax: 0.10.0
libtpu: 0.0.40
codegen_flags: <defaults>
</compile_context>

<pallas_src>
import math
import random
from fractions import Fraction

import jax
import jax.numpy as jnp
import numpy as np
from jax.experimental import pallas as pl
from jax.experimental.pallas import tpu as pltpu

_LOWPASS_FILTER_WIDTH = 6
_ROLLOFF = 0.99
_MAX_LANES_PER_STEP = 512        # column groups (lanes) per grid step, multiple of 128


def _sinc_resample_kernel(orig: int, new: int):
    """torchaudio._get_sinc_resample_kernel (sinc_interp_hann), float64 -> float32."""
    base_freq = min(orig, new) * _ROLLOFF
    width = int(math.ceil(_LOWPASS_FILTER_WIDTH * orig / base_freq))
    idx = np.arange(-width, width + orig, dtype=np.float64) / orig              # (K,)
    t = np.arange(0, -new, -1, dtype=np.float64)[:, None] / new + idx[None, :]  # (new, K)
    t = t * base_freq
    t = np.clip(t, -_LOWPASS_FILTER_WIDTH, _LOWPASS_FILTER_WIDTH)
    window = np.cos(t * math.pi / _LOWPASS_FILTER_WIDTH / 2.0) ** 2
    t = t * math.pi
    scale = base_freq / orig
    kernel = np.where(t == 0.0, 1.0, np.sin(t) / np.where(t == 0.0, 1.0, t))
    kernel = (kernel * window * scale).astype(np.float32)                        # (new, K)
    return kernel, width


def _resample_block_kernel(wm_ref, wt_ref, xm_ref, xt_ref, o_ref):
    """One grid step = C column groups (= C*h output frames), lane-dense.

    wm_ref: (h*new, hop)  block-Toeplitz weights, main band   (resident)
    wt_ref: (h*new, Ht)   block-Toeplitz weights, overlap band (resident)
    xm_ref: (hop, C)      framed padded waveform, main band
    xt_ref: (Ht,  C)      framed padded waveform, overlap band
    o_ref:  (h*new, C)    output: row (l*new + p), column = one group of h frames
    """
    # HIGHEST precision retained: DEFAULT (1-pass bf16) misses the 1e-3/1e-4
    # validation tolerance, and the MXU is not the dominant cost here anyway.
    o_ref[...] = (
        jnp.dot(wm_ref[...], xm_ref[...],
                preferred_element_type=jnp.float32,
                precision=jax.lax.Precision.HIGHEST)
        + jnp.dot(wt_ref[...], xt_ref[...],
                  preferred_element_type=jnp.float32,
                  precision=jax.lax.Precision.HIGHEST))


def resample(waveform, orig_freq: int, new_freq: int):
    """Pallas TPU implementation of torchaudio-style resample(waveform, orig, new)."""
    g = math.gcd(int(orig_freq), int(new_freq))
    orig, new = int(orig_freq) // g, int(new_freq) // g
    if orig == new:                           # same early-return as torchaudio
        return waveform

    in_shape = waveform.shape
    wave = waveform.reshape(-1, in_shape[-1]).astype(jnp.float32)
    B, T = wave.shape

    # ---- host-side, data-independent precompute (hoisted out of the kernel) ----
    kernel, width = _sinc_resample_kernel(orig, new)          # (new, K)
    K = kernel.shape[1]
    n_j = -(-K // orig)                                       # ceil(K / orig)
    # frames per column group: keep the main contraction <= 128 sublanes when
    # possible, and always >= n_j - 1 so the overlap band fits in one hop.
    h = max(1, min(8, 128 // orig), n_j - 1)
    hop = h * orig                                            # main-band height
    Ht = (n_j - 1) * orig                                     # overlap-band height

    n_frames = T // orig + 1                                  # torchaudio conv frame count
    M_cols = pl.cdiv(n_frames, h)                             # column groups per batch row

    # Lanes per grid step: as big as possible (<=512) while keeping >= ~4 steps
    # for pipelining / megacore sharding when the audio is long enough.
    C = 128
    while C < _MAX_LANES_PER_STEP and B * pl.cdiv(M_cols, 2 * C) >= 4:
        C *= 2
    M_cols_pad = C * pl.cdiv(M_cols, C)
    n_steps = (B * M_cols_pad) // C

    # Block-Toeplitz weights: Wg[l*new + p, s] = kernel[p, s - l*orig] (else 0).
    wfull = np.zeros((h, new, hop + Ht), np.float32)
    for l in range(h):
        wfull[l, :, l * orig: l * orig + K] = kernel
    wfull = wfull.reshape(h * new, hop + Ht)
    wm = jnp.asarray(wfull[:, :hop])                          # (h*new, hop)
    wt = jnp.asarray(wfull[:, hop:])                          # (h*new, Ht)

    # Framed padded waveform: column c of batch b holds samples
    # padded[b, c*hop : c*hop + hop + Ht] split into a main and an overlap band.
    # Columns of all batch rows are concatenated b-major along the lane axis.
    L_pad = (M_cols_pad + 1) * hop
    padded = jnp.pad(wave, ((0, 0), (width, L_pad - width - T)))
    main = padded[:, :M_cols_pad * hop].reshape(B, M_cols_pad, hop)
    tail = padded[:, hop:].reshape(B, M_cols_pad, hop)[:, :, :Ht]   # small band only
    xm = main.transpose(2, 0, 1).reshape(hop, B * M_cols_pad)       # (hop, B*M)
    xt = tail.transpose(2, 0, 1).reshape(Ht, B * M_cols_pad)        # (Ht,  B*M)

    cost = pl.CostEstimate(
        flops=2 * (h * new) * (hop + Ht) * B * M_cols_pad,
        transcendentals=0,
        bytes_accessed=4 * (B * M_cols_pad * (hop + Ht + h * new)
                            + (h * new) * (hop + Ht)))

    out2d = pl.pallas_call(
        _resample_block_kernel,
        out_shape=jax.ShapeDtypeStruct((h * new, B * M_cols_pad), jnp.float32),
        grid=(n_steps,),
        in_specs=[
            pl.BlockSpec((h * new, hop), lambda i: (0, 0)),   # resident weights
            pl.BlockSpec((h * new, Ht), lambda i: (0, 0)),    # resident weights
            pl.BlockSpec((hop, C), lambda i: (0, i)),
            pl.BlockSpec((Ht, C), lambda i: (0, i)),
        ],
        out_specs=pl.BlockSpec((h * new, C), lambda i: (0, i)),
        compiler_params=pltpu.CompilerParams(
            dimension_semantics=("parallel",),
            vmem_limit_bytes=32 * 1024 * 1024),
        cost_estimate=cost,
    )(wm, wt, xm, xt)

    # Time interleave + trim (free wrapper layout plumbing):
    # out2d[l*new + p, b*M + c]  ->  out[b, (c*h + l)*new + p]
    target = -(-(new * T) // orig)                            # ceil(new * T / orig)
    out = (out2d.reshape(h, new, B, M_cols_pad)
                 .transpose(2, 3, 0, 1)
                 .reshape(B, M_cols_pad * h * new)[:, :target])
    return out.reshape(in_shape[:-1] + (target,))


def resample_reference(waveform, orig_freq: int, new_freq: int):
    """Pure-XLA reference (strided conv), for correctness checking."""
    g = math.gcd(int(orig_freq), int(new_freq))
    orig, new = int(orig_freq) // g, int(new_freq) // g
    if orig == new:
        return waveform
    in_shape = waveform.shape
    wave = waveform.reshape(-1, in_shape[-1]).astype(jnp.float32)
    B, T = wave.shape
    kernel, width = _sinc_resample_kernel(orig, new)          # (new, K)
    padded = jnp.pad(wave, ((0, 0), (width, width + orig)))
    out = jax.lax.conv_general_dilated(
        padded[:, None, :], jnp.asarray(kernel)[:, None, :],
        window_strides=(orig,), padding="VALID",
        dimension_numbers=("NCH", "OIH", "NCH"),
        precision=jax.lax.Precision.HIGHEST)                  # (B, new, n_frames)
    out = jnp.transpose(out, (0, 2, 1)).reshape(B, -1)
    target = -(-(new * T) // orig)
    return out[:, :target].reshape(in_shape[:-1] + (target,))


class ResampleModule:
    """JAX/Pallas port of the PyTorch ResampleModule forward pass."""

    def __init__(self, max_semitones: int = 1):
        if max_semitones < 1:
            raise ValueError("max_semitones must be an integer >= 1")
        self.max_semitones = int(max_semitones)
        # TODO(synk): the RandomRateGenerator-synchronized rate path is host-side
        # Python state (no tensor ops); only the default sampling path is ported.

    def _random_rate(self):
        i = random.randint(-self.max_semitones, self.max_semitones)
        rate = 2.0 ** (i / 12.0)
        return Fraction(rate).limit_denominator(10).as_integer_ratio()

    def __call__(self, waveform):
        num, denom = self._random_rate()
        return resample(waveform, num, denom)


if __name__ == "__main__":
    random.seed(0)
    key = jax.random.PRNGKey(0)
    B, T = 2, 4000
    waveform = jax.random.normal(key, (B, T), dtype=jnp.float32)

    # (1) Fixed known rates (down- and up-sampling, ~ +-1 semitone) — always hit the kernel.
    for num, denom in ((11, 10), (9, 10)):
        out_fixed = jax.block_until_ready(resample(waveform, num, denom))
        ref_fixed = jax.block_until_ready(resample_reference(waveform, num, denom))
        assert out_fixed.shape == ref_fixed.shape and out_fixed.dtype == jnp.float32
        assert bool(jnp.allclose(out_fixed, ref_fixed, rtol=1e-3, atol=1e-4)), \
            f"mismatch vs reference (rate {num}/{denom})"

    # (2) Full module forward: host-side random rational rate, as in ResampleModule.forward.
    module = ResampleModule(max_semitones=1)
    num, denom = module._random_rate()
    out_rand = jax.block_until_ready(resample(waveform, num, denom))
    ref_rand = jax.block_until_ready(resample_reference(waveform, num, denom))
    assert out_rand.shape == ref_rand.shape
    assert bool(jnp.allclose(out_rand, ref_rand, rtol=1e-3, atol=1e-4)), \
        "mismatch vs reference (random rate)"

    print("KERNEL_OK")
</pallas_src>

<mosaic_0001>
module attributes {stable_mosaic.version = 11 : i64} {
  func.func @_resample_block_kernel(%arg0: i32, %arg1: memref<80x88xf32, #tpu.memory_space<vmem>>, %arg2: memref<80x22xf32, #tpu.memory_space<vmem>>, %arg3: memref<88x128xf32, #tpu.memory_space<vmem>>, %arg4: memref<22x128xf32, #tpu.memory_space<vmem>>, %arg5: memref<80x128xf32, #tpu.memory_space<vmem>>) attributes {dimension_semantics = [#tpu.dimension_semantics<parallel>], iteration_bounds = array<i64: 2>, scalar_prefetch = 0 : i64, scratch_operands = 0 : i64, tpu.core_type = #tpu.core_type<tc>, window_params = [{pipeline_mode = #tpu.pipeline_mode<synchronous>, transform_indices = @transform_0, window_bounds = array<i64: 80, 88>}, {pipeline_mode = #tpu.pipeline_mode<synchronous>, transform_indices = @transform_1, window_bounds = array<i64: 80, 22>}, {transform_indices = @transform_2, window_bounds = array<i64: 88, 128>}, {transform_indices = @transform_3, window_bounds = array<i64: 22, 128>}, {transform_indices = @transform_4, window_bounds = array<i64: 80, 128>}]} {
    %c0 = arith.constant 0 : index
    %c0_0 = arith.constant 0 : index
    %0 = vector.load %arg1[%c0, %c0_0] : memref<80x88xf32, #tpu.memory_space<vmem>>, vector<80x88xf32>
    %c0_1 = arith.constant 0 : index
    %c0_2 = arith.constant 0 : index
    %1 = vector.load %arg3[%c0_1, %c0_2] : memref<88x128xf32, #tpu.memory_space<vmem>>, vector<88x128xf32>
    %cst = arith.constant dense<0.000000e+00> : vector<80x128xf32>
    %2 = tpu.matmul %0, %1, %cst {dimension_numbers = #tpu.dot_dimension_numbers<[1], [0], [0], [1], [0, 0, 1, 1], [], []>, precision = #tpu.contract_precision<fp32>} : vector<80x88xf32>, vector<88x128xf32>, vector<80x128xf32> -> vector<80x128xf32>
    %c0_3 = arith.constant 0 : index
    %c0_4 = arith.constant 0 : index
    %3 = vector.load %arg2[%c0_3, %c0_4] : memref<80x22xf32, #tpu.memory_space<vmem>>, vector<80x22xf32>
    %c0_5 = arith.constant 0 : index
    %c0_6 = arith.constant 0 : index
    %4 = vector.load %arg4[%c0_5, %c0_6] : memref<22x128xf32, #tpu.memory_space<vmem>>, vector<22x128xf32>
    %cst_7 = arith.constant dense<0.000000e+00> : vector<80x128xf32>
    %5 = tpu.matmul %3, %4, %cst_7 {dimension_numbers = #tpu.dot_dimension_numbers<[1], [0], [0], [1], [0, 0, 1, 1], [], []>, precision = #tpu.contract_precision<fp32>} : vector<80x22xf32>, vector<22x128xf32>, vector<80x128xf32> -> vector<80x128xf32>
    %6 = arith.addf %2, %5 : vector<80x128xf32>
    %c0_8 = arith.constant 0 : index
    %c0_9 = arith.constant 0 : index
    %7 = vector.load %arg5[%c0_8, %c0_9] : memref<80x128xf32, #tpu.memory_space<vmem>>, vector<80x128xf32>
    tpu.vector_store %arg5[%c0_8, %c0_9], %6 {strides = array<i32>} : memref<80x128xf32, #tpu.memory_space<vmem>>, vector<80x128xf32>,
    return
  }
  func.func @transform_0(%arg0: i32) -> (i32, i32) {
    %c0_i32 = arith.constant 0 : i32
    %c0_i32_0 = arith.constant 0 : i32
    %c0_i32_1 = arith.constant 0 : i32
    return %c0_i32, %c0_i32_0 : i32, i32
  }
  func.func @transform_1(%arg0: i32) -> (i32, i32) {
    %c0_i32 = arith.constant 0 : i32
    %c0_i32_0 = arith.constant 0 : i32
    %c0_i32_1 = arith.constant 0 : i32
    return %c0_i32, %c0_i32_0 : i32, i32
  }
  func.func @transform_2(%arg0: i32) -> (i32, i32) {
    %c0_i32 = arith.constant 0 : i32
    %c0_i32_0 = arith.constant 0 : i32
    return %c0_i32, %arg0 : i32, i32
  }
  func.func @transform_3(%arg0: i32) -> (i32, i32) {
    %c0_i32 = arith.constant 0 : i32
    %c0_i32_0 = arith.constant 0 : i32
    return %c0_i32, %arg0 : i32, i32
  }
  func.func @transform_4(%arg0: i32) -> (i32, i32) {
    %c0_i32 = arith.constant 0 : i32
    %c0_i32_0 = arith.constant 0 : i32
    return %c0_i32, %arg0 : i32, i32
  }
}

</mosaic_0001>

<llo_original>
// kernel: tpu_custom_call.1
$region0: #{tpu_custom_call.1}
  #allocation0 [shape = 'u32[]', space=smem, size = 0x4, offset = 0x4, fixed_abs, tag = 'smem constant byte address 0x4 - core index']
  #allocation1 [shape = 'u32[72,128]{1,0:T(1,128)}', space=vmem, size = 0x9000, scoped, tag = 'internal scratch']
  %s0 = inlined_call_operand.vmem [shape: f32[80,88], index: 0, kind: input, shape index: {}]
  %s1 = inlined_call_operand.vmem [shape: f32[80,22], index: 1, kind: input, shape index: {}]
  %s2 = inlined_call_operand.hbm [shape: f32[88,256], index: 2, kind: input, shape index: {}]
  %s3 = inlined_call_operand.hbm [shape: f32[22,256], index: 3, kind: input, shape index: {}]
  %s4 = inlined_call_operand.hbm [shape: f32[80,256], index: 4, kind: output, shape index: {}]
  %s5 = sld [smem:[#allocation0]]
  $region57: #{tpu_custom_call.1} parent=0
    _
  %s7 = ssub.s32 1, %s5
  %s8 = scalar_select 0, %s7, %s5
  $region1: #{tpu_custom_call.1} parent=0
    #allocation2 [shape = 'u8[90112]{0}', space=vmem, size = 0x16000, scoped, tag = 'input window, operand 2']
    #allocation3 [shape = 's32[2]{0}', space=sflag, size = 0x8, scoped, tag = 'scoped memory for tpu_custom_call.1']
    #allocation4 [shape = 's32[2]{0}', space=sflag, size = 0x8, scoped, tag = 'scoped memory for tpu_custom_call.1']
    #allocation5 [shape = 'u8[24576]{0}', space=vmem, size = 0x6000, scoped, tag = 'input window, operand 3']
    #allocation6 [shape = 's32[2]{0}', space=sflag, size = 0x8, scoped, tag = 'scoped memory for tpu_custom_call.1']
    #allocation7 [shape = 'u8[81920]{0}', space=vmem, size = 0x14000, scoped, tag = 'output window, operand 0']
    %9 = vsyncpa [#allocation3], 0
    %s10 = scalar_lea.sflag [#allocation3], 1
    %11 = vsyncpa %s10, 0
    %12 = vsyncpa [#allocation6], 0
    %s13 = scalar_lea.sflag [#allocation6], 1
    %14 = vsyncpa %s13, 0
    %15 = vsyncpa [#allocation4], 0
    %s16 = scalar_lea.sflag [#allocation4], 1
    %17 = vsyncpa %s16, 0
    loop: start=0, step=1, limit=4
    $region2: #{tpu_custom_call.1} parent=1 // loop_pre_header
      _
    $region3: #{tpu_custom_call.1} parent=1 // loop_header
      %s19 = sphi 0, %s23
      %p20 = scmp.ge.s32.totalorder %s19, 4
      %s27 = sphi 0, %s27
      %s29 = sphi 0, %s27
      %s30 = sphi 0, %s29
      %s44 = sphi 0, %s30
      %s48 = sphi 0, %s48
      %s50 = sphi 0, %s48
      %s51 = sphi 0, %s50
      %s65 = sphi 0, %s51
      %s71 = sphi 0, %s73
      %s74 = sphi 0, %s71
      %s75 = sphi 0, %s74
      %s91 = sphi 0, %s75
      %s97 = sphi 0, %s99
      %s100 = sphi 0, %s97
      %s101 = sphi 0, %s100
      %s117 = sphi 0, %s101
      %s123 = sphi 0, %s125
      %s126 = sphi 0, %s123
      %s127 = sphi 0, %s126
      %s143 = sphi 0, %s127
    $region4: #{tpu_custom_call.1} parent=1 // loop_header_branch
      %22 = sbr.rel (%p20) target = $region8
    $region5: #{tpu_custom_call.1} parent=1 // loop_body
      %s24 = ssub.s32 %s19, 1
      %s25 = ssub.s32 %s19, 2
      %s26 = sadd.s32 %s19, 1
      %s28 = sadd.s32 %s27, 1
      %p31 = scmp.eq.s32.totalorder %s19, 1
      %p32 = scmp.ne.s32.totalorder %s27, %s29
      %p33 = scmp.eq.s32.totalorder %s19, 0
      %p34 = por %p32, %p33
      %p35 = scmp.ne.s32.totalorder %s27, %s29
      %p36 = scmp.eq.s32.totalorder %s24, 1
      %p37 = por %p35, %p36
      %p38 = scmp.ne.s32.totalorder %s29, %s30
      %p39 = scmp.eq.s32.totalorder %s24, 0
      %p40 = por %p38, %p39
      %p41 = scmp.ne.s32.totalorder %s29, %s30
      %p42 = scmp.eq.s32.totalorder %s25, 1
      %p43 = por %p41, %p42
      %p45 = scmp.ne.s32.totalorder %s30, %s44
      %p46 = scmp.eq.s32.totalorder %s25, 0
      %p47 = por %p45, %p46
      %s49 = sadd.s32 %s48, 1
      %p52 = scmp.eq.s32.totalorder %s19, 1
      %p53 = scmp.ne.s32.totalorder %s48, %s50
      %p54 = scmp.eq.s32.totalorder %s19, 0
      %p55 = por %p53, %p54
      %p56 = scmp.ne.s32.totalorder %s48, %s50
      %p57 = scmp.eq.s32.totalorder %s24, 1
      %p58 = por %p56, %p57
      %p59 = scmp.ne.s32.totalorder %s50, %s51
      %p60 = scmp.eq.s32.totalorder %s24, 0
      %p61 = por %p59, %p60
      %p62 = scmp.ne.s32.totalorder %s50, %s51
      %p63 = scmp.eq.s32.totalorder %s25, 1
      %p64 = por %p62, %p63
      %p66 = scmp.ne.s32.totalorder %s51, %s65
      %p67 = scmp.eq.s32.totalorder %s25, 0
      %p68 = por %p66, %p67
      %s69 = ssub.s32 %s19, %s26
      %p70 = scmp.eq.s32.totalorder %s69, 0
      %s72 = sadd.s32 %s71, 1
      %s73 = scalar_select %p70, %s71, %s72
      %p76 = pneg %p70
      %p77 = scmp.eq.s32.totalorder %s19, 1
      %p78 = por %p76, %p77
      %p79 = scmp.ne.s32.totalorder %s71, %s74
      %p80 = scmp.eq.s32.totalorder %s19, 0
      %p81 = por %p79, %p80
      %p82 = scmp.ne.s32.totalorder %s71, %s74
      %p83 = scmp.eq.s32.totalorder %s24, 1
      %p84 = por %p82, %p83
      %p85 = scmp.ne.s32.totalorder %s74, %s75
      %p86 = scmp.eq.s32.totalorder %s24, 0
      %p87 = por %p85, %p86
      %p88 = scmp.ne.s32.totalorder %s74, %s75
      %p89 = scmp.eq.s32.totalorder %s25, 1
      %p90 = por %p88, %p89
      %p92 = scmp.ne.s32.totalorder %s75, %s91
      %p93 = scmp.eq.s32.totalorder %s25, 0
      %p94 = por %p92, %p93
      %s95 = ssub.s32 %s19, %s26
      %p96 = scmp.eq.s32.totalorder %s95, 0
      %s98 = sadd.s32 %s97, 1
      %s99 = scalar_select %p96, %s97, %s98
      %p102 = pneg %p96
      %p103 = scmp.eq.s32.totalorder %s19, 1
      %p104 = por %p102, %p103
      %p105 = scmp.ne.s32.totalorder %s97, %s100
      %p106 = scmp.eq.s32.totalorder %s19, 0
      %p107 = por %p105, %p106
      %p108 = scmp.ne.s32.totalorder %s97, %s100
      %p109 = scmp.eq.s32.totalorder %s24, 1
      %p110 = por %p108, %p109
      %p111 = scmp.ne.s32.totalorder %s100, %s101
      %p112 = scmp.eq.s32.totalorder %s24, 0
      %p113 = por %p111, %p112
      %p114 = scmp.ne.s32.totalorder %s100, %s101
      %p115 = scmp.eq.s32.totalorder %s25, 1
      %p116 = por %p114, %p115
      %p118 = scmp.ne.s32.totalorder %s101, %s117
      %p119 = scmp.eq.s32.totalorder %s25, 0
      %p120 = por %p118, %p119
      %s121 = ssub.s32 %s19, %s26
      %p122 = scmp.eq.s32.totalorder %s121, 0
      %s124 = sadd.s32 %s123, 1
      %s125 = scalar_select %p122, %s123, %s124
      %p128 = pneg %p122
      %p129 = scmp.eq.s32.totalorder %s19, 1
      %p130 = por %p128, %p129
      %p131 = scmp.ne.s32.totalorder %s123, %s126
      %p132 = scmp.eq.s32.totalorder %s19, 0
      %p133 = por %p131, %p132
      %p134 = scmp.ne.s32.totalorder %s123, %s126
      %p135 = scmp.eq.s32.totalorder %s24, 1
      %p136 = por %p134, %p135
      %p137 = scmp.ne.s32.totalorder %s126, %s127
      %p138 = scmp.eq.s32.totalorder %s24, 0
      %p139 = por %p137, %p138
      %p140 = scmp.ne.s32.totalorder %s126, %s127
      %p141 = scmp.eq.s32.totalorder %s25, 1
      %p142 = por %p140, %p141
      %p144 = scmp.ne.s32.totalorder %s127, %s143
      %p145 = scmp.eq.s32.totalorder %s25, 0
      %p146 = por %p144, %p145
      %p147 = scmp.le.s32.totalorder 1, %s19
      %p148 = scmp.lt.s32.totalorder %s19, 3
      %p149 = pnand %p147, %p148
      %p150 = pneg %p149
      // Predicated region
      $region9: #{tpu_custom_call.1} parent=5 // pred_check
        _
      $region10: #{tpu_custom_call.1} parent=5 // pred_check_branch
        %152 = sbr.rel (%p149) target = $region12
      $region11: #{tpu_custom_call.1} parent=5 // pred_region
        %s153 = ssub.s32 %s19, 1
        // Predicated region
        $region13: #{tpu_custom_call.1} parent=11 // pred_check
          %p154 = pneg %p40
        $region14: #{tpu_custom_call.1} parent=11 // pred_check_branch
          %156 = sbr.rel (%p154) target = $region16
        $region15: #{tpu_custom_call.1} parent=11 // pred_region
          _
        $region16: #{tpu_custom_call.1} parent=11 // pred_fallthru
          _
        // Predicated region
        $region17: #{tpu_custom_call.1} parent=11 // pred_check
          %p157 = pneg %p61
        $region18: #{tpu_custom_call.1} parent=11 // pred_check_branch
          %159 = sbr.rel (%p157) target = $region20
        $region19: #{tpu_custom_call.1} parent=11 // pred_region
          _
        $region20: #{tpu_custom_call.1} parent=11 // pred_fallthru
          _
      $region12: #{tpu_custom_call.1} parent=5 // pred_fallthru
        _
      %p160 = scmp.lt.s32.totalorder %s19, 2
      // Predicated region
      $region21: #{tpu_custom_call.1} parent=5 // pred_check
        %p161 = pneg %p160
      $region22: #{tpu_custom_call.1} parent=5 // pred_check_branch
        %163 = sbr.rel (%p161) target = $region24
      $region23: #{tpu_custom_call.1} parent=5 // pred_region
        // Predicated region
        $region25: #{tpu_custom_call.1} parent=23 // pred_check
          %p164 = pneg %p81
        $region26: #{tpu_custom_call.1} parent=23 // pred_check_branch
          %166 = sbr.rel (%p164) target = $region28
        $region27: #{tpu_custom_call.1} parent=23 // pred_region
          %s167 = sand.u32 %s71, 1
          %s168 = scalar_lea.sflag [#allocation3], %s167
          %s169 = sand.u32 %s71, 1
          %s170 = smul.addr %s169, 88
          %s171 = scalar_lea.vmem [#allocation2], %s170
          %173 = vsyncadd %s168, 0
          %s174 = smul.addr %s19, 8
          %s175 = scalar_lea.hbm %s2, %s174
          %s176 = sshll.u32 %s175, 4
          %s177 = int_to_ptr.hbm [resolvable:$true] %s176
          %s178 = sshll.u32 %s171, 4
          %s179 = int_to_ptr.vmem [resolvable:$true] %s178
          %184 = dma.hbm_to_vmem [thread:$0]  %s177, 1408, %s179, %s168, 256, 128, 8
        $region28: #{tpu_custom_call.1} parent=23 // pred_fallthru
          _
        // Predicated region
        $region29: #{tpu_custom_call.1} parent=23 // pred_check
          %p185 = pneg %p107
        $region30: #{tpu_custom_call.1} parent=23 // pred_check_branch
          %187 = sbr.rel (%p185) target = $region32
        $region31: #{tpu_custom_call.1} parent=23 // pred_region
          %s188 = sand.u32 %s97, 1
          %s189 = scalar_lea.sflag [#allocation6], %s188
          %s190 = sand.u32 %s97, 1
          %s191 = smul.addr %s190, 24
          %s192 = scalar_lea.vmem [#allocation5], %s191
          %194 = vsyncadd %s189, 0
          %s195 = smul.addr %s19, 8
          %s196 = scalar_lea.hbm %s3, %s195
          %s197 = sshll.u32 %s196, 4
          %s198 = int_to_ptr.hbm [resolvable:$true] %s197
          %s199 = sshll.u32 %s192, 4
          %s200 = int_to_ptr.vmem [resolvable:$true] %s199
          %205 = dma.hbm_to_vmem [thread:$0]  %s198, 384, %s200, %s189, 256, 128, 8
        $region32: #{tpu_custom_call.1} parent=23 // pred_fallthru
          _
      $region24: #{tpu_custom_call.1} parent=5 // pred_fallthru
        _
      %p206 = scmp.le.s32.totalorder 1, %s19
      %p207 = scmp.lt.s32.totalorder %s19, 3
      %p208 = pnand %p206, %p207
      %p209 = pneg %p208
      // Predicated region
      $region33: #{tpu_custom_call.1} parent=5 // pred_check
        _
      $region34: #{tpu_custom_call.1} parent=5 // pred_check_branch
        %211 = sbr.rel (%p208) target = $region36
      $region35: #{tpu_custom_call.1} parent=5 // pred_region
        %s212 = ssub.s32 %s19, 1
        %s213 = sand.u32 %s74, 1
        %s214 = scalar_lea.sflag [#allocation3], %s213
        %s215 = sand.u32 %s74, 1
        %s216 = smul.addr %s215, 88
        %s217 = scalar_lea.vmem [#allocation2], %s216
        // Predicated region
        $region37: #{tpu_custom_call.1} parent=35 // pred_check
          %p218 = pneg %p87
        $region38: #{tpu_custom_call.1} parent=35 // pred_check_branch
          %220 = sbr.rel (%p218) target = $region40
        $region39: #{tpu_custom_call.1} parent=35 // pred_region
          %222 = dma.done %s214, 1408
        $region40: #{tpu_custom_call.1} parent=35 // pred_fallthru
          _
        %s223 = sand.u32 %s100, 1
        %s224 = scalar_lea.sflag [#allocation6], %s223
        %s225 = sand.u32 %s100, 1
        %s226 = smul.addr %s225, 24
        %s227 = scalar_lea.vmem [#allocation5], %s226
        // Predicated region
        $region41: #{tpu_custom_call.1} parent=35 // pred_check
          %p228 = pneg %p113
        $region42: #{tpu_custom_call.1} parent=35 // pred_check_branch
          %230 = sbr.rel (%p228) target = $region44
        $region43: #{tpu_custom_call.1} parent=35 // pred_region
          %232 = dma.done %s224, 384
        $region44: #{tpu_custom_call.1} parent=35 // pred_fallthru
          _
        %p233 = pneg %p40
        %p234 = pneg %p37
        %p235 = pneg %p61
        %p236 = pneg %p58
        %s237 = sand.u32 %s74, 1
        %s238 = scalar_lea.sflag [#allocation3], %s237
        %s239 = sand.u32 %s74, 1
        %s240 = smul.addr %s239, 88
        %s241 = scalar_lea.vmem [#allocation2], %s240
        %p242 = pneg %p87
        %p243 = pneg %p84
        %s244 = sand.u32 %s100, 1
        %s245 = scalar_lea.sflag [#allocation6], %s244
        %s246 = sand.u32 %s100, 1
        %s247 = smul.addr %s246, 24
        %s248 = scalar_lea.vmem [#allocation5], %s247
        %p249 = pneg %p113
        %p250 = pneg %p110
        %p251 = pneg %p139
        %p252 = pneg %p136
        %s253 = sand.u32 %s126, 1
        %s254 = scalar_lea.sflag [#allocation4], %s253
        %s255 = sand.u32 %s126, 1
        %s256 = smul.addr %s255, 80
        %s257 = scalar_lea.vmem [#allocation7], %s256
        %v258 = vld [vmem:[%s0] sm:$0xff]
        %v259 = vld [vmem:[%s0 + $0x8] sm:$0xff]
        %v260 = vld [vmem:[%s0 + $0x10] sm:$0xff]
        %v261 = vld [vmem:[%s0 + $0x18] sm:$0xff]
        %v262 = vld [vmem:[%s0 + $0x20] sm:$0xff]
        %v263 = vld [vmem:[%s0 + $0x28] sm:$0xff]
        %v264 = vld [vmem:[%s0 + $0x30] sm:$0xff]
        %v265 = vld [vmem:[%s0 + $0x38] sm:$0xff]
        %v266 = vld [vmem:[%s0 + $0x40] sm:$0xff]
        %v267 = vld [vmem:[%s0 + $0x48] sm:$0xff]
        %v268 = vld [vmem:[%s217] sm:$0xff]
        %v269 = vld [vmem:[%s217 + $0x8] sm:$0xff]
        %v270 = vld [vmem:[%s217 + $0x10] sm:$0xff]
        %v271 = vld [vmem:[%s217 + $0x18] sm:$0xff]
        %v272 = vld [vmem:[%s217 + $0x20] sm:$0xff]
        %v273 = vld [vmem:[%s217 + $0x28] sm:$0xff]
        %v274 = vld [vmem:[%s217 + $0x30] sm:$0xff]
        %v275 = vld [vmem:[%s217 + $0x38] sm:$0xff]
        %v276 = vld [vmem:[%s217 + $0x40] sm:$0xff]
        %v277 = vld [vmem:[%s217 + $0x48] sm:$0xff]
        %v278 = vld [vmem:[%s217 + $0x50] sm:$0xff]
        %v279 = vld [vmem:[%s1] sm:$0xff]
        %v280 = vld [vmem:[%s1 + $0x8] sm:$0xff]
        %v281 = vld [vmem:[%s1 + $0x10] sm:$0xff]
        %v282 = vld [vmem:[%s1 + $0x18] sm:$0xff]
        %v283 = vld [vmem:[%s1 + $0x20] sm:$0xff]
        %v284 = vld [vmem:[%s1 + $0x28] sm:$0xff]
        %v285 = vld [vmem:[%s1 + $0x30] sm:$0xff]
        %v286 = vld [vmem:[%s1 + $0x38] sm:$0xff]
        %v287 = vld [vmem:[%s1 + $0x40] sm:$0xff]
        %v288 = vld [vmem:[%s1 + $0x48] sm:$0xff]
        %v289 = vld [vmem:[%s227] sm:$0xff]
        %v290 = vld [vmem:[%s227 + $0x8] sm:$0xff]
        %v291 = vld [vmem:[%s227 + $0x10] sm:$0x3f]
        %vm292 = vcmask 179200
        %v294 = vsel %vm292, %v279, 0
        %v297 = vsel %vm292, %v280, 0
        %v300 = vsel %vm292, %v281, 0
        %v303 = vsel %vm292, %v282, 0
        %v306 = vsel %vm292, %v283, 0
        %v309 = vsel %vm292, %v284, 0
        %v312 = vsel %vm292, %v285, 0
        %v315 = vsel %vm292, %v286, 0
        %v318 = vsel %vm292, %v287, 0
        %v321 = vsel %vm292, %v288, 0
        %vm323 = vcmask 1045504
        %v325 = vsel %vm323, %v291, 0
        %327 = vmatpush.msra.mxu0 0.0
        %328 = vmatpush.msra.mxu0 0.0
        %329 = vmatpush.msra.mxu0 0.0
        %330 = vmatpush.msra.mxu0 0.0
        %331 = vmatpush.msra.mxu0 0.0
        %332 = vmatpush.msra.mxu0 0.0
        %333 = vmatpush.msra.mxu0 0.0
        %334 = vmatpush.msra.mxu0 0.0
        %335 = vmatpush.msra.mxu0 0.0
        %336 = vmatpush.msra.mxu0 0.0
        %337 = vmatpush.msra.mxu0 0.0
        %338 = vmatpush.msra.mxu0 0.0
        %339 = vmatpush.msra.mxu0 0.0
        %v340 = vand.u32 %v325, 4294901760
        %341 = vmatpush.msra.mxu0 %v340
        %v342 = vand.u32 %v290, 4294901760
        %343 = vmatpush.msra.mxu0 %v342
        %v344 = vand.u32 %v289, 4294901760
        %345 = vmatpush.msra.mxu0 %v344
        %v346 = vand.u32 %v294, 4294901760
        %v347 = vsub.f32 %v294, %v346
        %v348 = vand.u32 %v347, 4294901760
        %v349 = vsub.f32 %v347, %v348
        %v350 = vand.u32 %v349, 4294901760
        %351 = vmatmul.f32.gmra.mxu0 %v350
        %v352 = vpop.f32.mrf.mxu0
        %v353 = vadd.f32 0.0, %v352
        %v354 = vand.u32 %v297, 4294901760
        %v355 = vsub.f32 %v297, %v354
        %v356 = vand.u32 %v355, 4294901760
        %v357 = vsub.f32 %v355, %v356
        %v358 = vand.u32 %v357, 4294901760
        %359 = vmatmul.f32.gmra.mxu0 %v358
        %v360 = vpop.f32.mrf.mxu0
        %v361 = vadd.f32 0.0, %v360
        %v362 = vand.u32 %v300, 4294901760
        %v363 = vsub.f32 %v300, %v362
        %v364 = vand.u32 %v363, 4294901760
        %v365 = vsub.f32 %v363, %v364
        %v366 = vand.u32 %v365, 4294901760
        %367 = vmatmul.f32.gmra.mxu0 %v366
        %v368 = vpop.f32.mrf.mxu0
        %v369 = vadd.f32 0.0, %v368
        %v370 = vand.u32 %v303, 4294901760
        %v371 = vsub.f32 %v303, %v370
        %v372 = vand.u32 %v371, 4294901760
        %v373 = vsub.f32 %v371, %v372
        %v374 = vand.u32 %v373, 4294901760
        %375 = vmatmul.f32.gmra.mxu0 %v374
        %v376 = vpop.f32.mrf.mxu0
        %v377 = vadd.f32 0.0, %v376
        %v378 = vand.u32 %v306, 4294901760
        %v379 = vsub.f32 %v306, %v378
        %v380 = vand.u32 %v379, 4294901760
        %v381 = vsub.f32 %v379, %v380
        %v382 = vand.u32 %v381, 4294901760
        %383 = vmatmul.f32.gmra.mxu0 %v382
        %v384 = vpop.f32.mrf.mxu0
        %v385 = vadd.f32 0.0, %v384
        %v386 = vand.u32 %v309, 4294901760
        %v387 = vsub.f32 %v309, %v386
        %v388 = vand.u32 %v387, 4294901760
        %v389 = vsub.f32 %v387, %v388
        %v390 = vand.u32 %v389, 4294901760
        %391 = vmatmul.f32.gmra.mxu0 %v390
        %v392 = vpop.f32.mrf.mxu0
        %v393 = vadd.f32 0.0, %v392
        %v394 = vand.u32 %v312, 4294901760
        %v395 = vsub.f32 %v312, %v394
        %v396 = vand.u32 %v395, 4294901760
        %v397 = vsub.f32 %v395, %v396
        %v398 = vand.u32 %v397, 4294901760
        %399 = vmatmul.f32.gmra.mxu0 %v398
        %v400 = vpop.f32.mrf.mxu0
        %v401 = vadd.f32 0.0, %v400
        %v402 = vand.u32 %v315, 4294901760
        %v403 = vsub.f32 %v315, %v402
        %v404 = vand.u32 %v403, 4294901760
        %v405 = vsub.f32 %v403, %v404
        %v406 = vand.u32 %v405, 4294901760
        %407 = vmatmul.f32.gmra.mxu0 %v406
        %v408 = vpop.f32.mrf.mxu0
        %v409 = vadd.f32 0.0, %v408
        %v410 = vand.u32 %v318, 4294901760
        %v411 = vsub.f32 %v318, %v410
        %v412 = vand.u32 %v411, 4294901760
        %v413 = vsub.f32 %v411, %v412
        %v414 = vand.u32 %v413, 4294901760
        %415 = vmatmul.f32.gmra.mxu0 %v414
        %v416 = vpop.f32.mrf.mxu0
        %v417 = vadd.f32 0.0, %v416
        %v418 = vand.u32 %v321, 4294901760
        %v419 = vsub.f32 %v321, %v418
        %v420 = vand.u32 %v419, 4294901760
        %v421 = vsub.f32 %v419, %v420
        %v422 = vand.u32 %v421, 4294901760
        %423 = vmatmul.f32.gmra.mxu0 %v422
        %v424 = vpop.f32.mrf.mxu0
        %v425 = vadd.f32 0.0, %v424
        %426 = vdwg.mxu0
        %427 = vmatpush.msra.mxu0 0.0
        %428 = vmatpush.msra.mxu0 0.0
        %429 = vmatpush.msra.mxu0 0.0
        %430 = vmatpush.msra.mxu0 0.0
        %431 = vmatpush.msra.mxu0 0.0
        %432 = vmatpush.msra.mxu0 0.0
        %433 = vmatpush.msra.mxu0 0.0
        %434 = vmatpush.msra.mxu0 0.0
        %435 = vmatpush.msra.mxu0 0.0
        %436 = vmatpush.msra.mxu0 0.0
        %437 = vmatpush.msra.mxu0 0.0
        %438 = vmatpush.msra.mxu0 0.0
        %439 = vmatpush.msra.mxu0 0.0
        %v440 = vand.u32 %v325, 4294901760
        %v441 = vsub.f32 %v325, %v440
        %v442 = vand.u32 %v441, 4294901760
        %v443 = vsub.f32 %v441, %v442
        %v444 = vand.u32 %v443, 4294901760
        %445 = vmatpush.msra.mxu0 %v444
        %v446 = vand.u32 %v290, 4294901760
        %v447 = vsub.f32 %v290, %v446
        %v448 = vand.u32 %v447, 4294901760
        %v449 = vsub.f32 %v447, %v448
        %v450 = vand.u32 %v449, 4294901760
        %451 = vmatpush.msra.mxu0 %v450
        %v452 = vand.u32 %v289, 4294901760
        %v453 = vsub.f32 %v289, %v452
        %v454 = vand.u32 %v453, 4294901760
        %v455 = vsub.f32 %v453, %v454
        %v456 = vand.u32 %v455, 4294901760
        %457 = vmatpush.msra.mxu0 %v456
        %v458 = vand.u32 %v294, 4294901760
        %459 = vmatmul.f32.gmra.mxu0 %v458
        %v460 = vpop.f32.mrf.mxu0
        %v461 = vadd.f32 %v353, %v460
        %v462 = vand.u32 %v297, 4294901760
        %463 = vmatmul.f32.gmra.mxu0 %v462
        %v464 = vpop.f32.mrf.mxu0
        %v465 = vadd.f32 %v361, %v464
        %v466 = vand.u32 %v300, 4294901760
        %467 = vmatmul.f32.gmra.mxu0 %v466
        %v468 = vpop.f32.mrf.mxu0
        %v469 = vadd.f32 %v369, %v468
        %v470 = vand.u32 %v303, 4294901760
        %471 = vmatmul.f32.gmra.mxu0 %v470
        %v472 = vpop.f32.mrf.mxu0
        %v473 = vadd.f32 %v377, %v472
        %v474 = vand.u32 %v306, 4294901760
        %475 = vmatmul.f32.gmra.mxu0 %v474
        %v476 = vpop.f32.mrf.mxu0
        %v477 = vadd.f32 %v385, %v476
        %v478 = vand.u32 %v309, 4294901760
        %479 = vmatmul.f32.gmra.mxu0 %v478
        %v480 = vpop.f32.mrf.mxu0
        %v481 = vadd.f32 %v393, %v480
        %v482 = vand.u32 %v312, 4294901760
        %483 = vmatmul.f32.gmra.mxu0 %v482
        %v484 = vpop.f32.mrf.mxu0
        %v485 = vadd.f32 %v401, %v484
        %v486 = vand.u32 %v315, 4294901760
        %487 = vmatmul.f32.gmra.mxu0 %v486
        %v488 = vpop.f32.mrf.mxu0
        %v489 = vadd.f32 %v409, %v488
        %v490 = vand.u32 %v318, 4294901760
        %491 = vmatmul.f32.gmra.mxu0 %v490
        %v492 = vpop.f32.mrf.mxu0
        %v493 = vadd.f32 %v417, %v492
        %v494 = vand.u32 %v321, 4294901760
        %495 = vmatmul.f32.gmra.mxu0 %v494
        %v496 = vpop.f32.mrf.mxu0
        %v497 = vadd.f32 %v425, %v496
        %498 = vdwg.mxu0
        %499 = vmatpush.msra.mxu0 0.0
        %500 = vmatpush.msra.mxu0 0.0
        %501 = vmatpush.msra.mxu0 0.0
        %502 = vmatpush.msra.mxu0 0.0
        %503 = vmatpush.msra.mxu0 0.0
        %504 = vmatpush.msra.mxu0 0.0
        %505 = vmatpush.msra.mxu0 0.0
        %506 = vmatpush.msra.mxu0 0.0
        %507 = vmatpush.msra.mxu0 0.0
        %508 = vmatpush.msra.mxu0 0.0
        %509 = vmatpush.msra.mxu0 0.0
        %510 = vmatpush.msra.mxu0 0.0
        %511 = vmatpush.msra.mxu0 0.0
        %v512 = vand.u32 %v325, 4294901760
        %v513 = vsub.f32 %v325, %v512
        %514 = vmatpush.msra.mxu0 %v513
        %v515 = vand.u32 %v290, 4294901760
        %v516 = vsub.f32 %v290, %v515
        %517 = vmatpush.msra.mxu0 %v516
        %v518 = vand.u32 %v289, 4294901760
        %v519 = vsub.f32 %v289, %v518
        %520 = vmatpush.msra.mxu0 %v519
        %v521 = vand.u32 %v294, 4294901760
        %v522 = vsub.f32 %v294, %v521
        %523 = vmatmul.f32.gmra.mxu0 %v522
        %v524 = vpop.f32.mrf.mxu0
        %v525 = vadd.f32 %v461, %v524
        %v526 = vand.u32 %v297, 4294901760
        %v527 = vsub.f32 %v297, %v526
        %528 = vmatmul.f32.gmra.mxu0 %v527
        %v529 = vpop.f32.mrf.mxu0
        %v530 = vadd.f32 %v465, %v529
        %v531 = vand.u32 %v300, 4294901760
        %v532 = vsub.f32 %v300, %v531
        %533 = vmatmul.f32.gmra.mxu0 %v532
        %v534 = vpop.f32.mrf.mxu0
        %v535 = vadd.f32 %v469, %v534
        %v536 = vand.u32 %v303, 4294901760
        %v537 = vsub.f32 %v303, %v536
        %538 = vmatmul.f32.gmra.mxu0 %v537
        %v539 = vpop.f32.mrf.mxu0
        %v540 = vadd.f32 %v473, %v539
        %v541 = vand.u32 %v306, 4294901760
        %v542 = vsub.f32 %v306, %v541
        %543 = vmatmul.f32.gmra.mxu0 %v542
        %v544 = vpop.f32.mrf.mxu0
        %v545 = vadd.f32 %v477, %v544
        %v546 = vand.u32 %v309, 4294901760
        %v547 = vsub.f32 %v309, %v546
        %548 = vmatmul.f32.gmra.mxu0 %v547
        %v549 = vpop.f32.mrf.mxu0
        %v550 = vadd.f32 %v481, %v549
        %v551 = vand.u32 %v312, 4294901760
        %v552 = vsub.f32 %v312, %v551
        %553 = vmatmul.f32.gmra.mxu0 %v552
        %v554 = vpop.f32.mrf.mxu0
        %v555 = vadd.f32 %v485, %v554
        %v556 = vand.u32 %v315, 4294901760
        %v557 = vsub.f32 %v315, %v556
        %558 = vmatmul.f32.gmra.mxu0 %v557
        %v559 = vpop.f32.mrf.mxu0
        %v560 = vadd.f32 %v489, %v559
        %v561 = vand.u32 %v318, 4294901760
        %v562 = vsub.f32 %v318, %v561
        %563 = vmatmul.f32.gmra.mxu0 %v562
        %v564 = vpop.f32.mrf.mxu0
        %v565 = vadd.f32 %v493, %v564
        %v566 = vand.u32 %v321, 4294901760
        %v567 = vsub.f32 %v321, %v566
        %568 = vmatmul.f32.gmra.mxu0 %v567
        %v569 = vpop.f32.mrf.mxu0
        %v570 = vadd.f32 %v497, %v569
        %571 = vdwg.mxu0
        %572 = vmatpush.msra.mxu0 0.0
        %573 = vmatpush.msra.mxu0 0.0
        %574 = vmatpush.msra.mxu0 0.0
        %575 = vmatpush.msra.mxu0 0.0
        %576 = vmatpush.msra.mxu0 0.0
        %577 = vmatpush.msra.mxu0 0.0
        %578 = vmatpush.msra.mxu0 0.0
        %579 = vmatpush.msra.mxu0 0.0
        %580 = vmatpush.msra.mxu0 0.0
        %581 = vmatpush.msra.mxu0 0.0
        %582 = vmatpush.msra.mxu0 0.0
        %583 = vmatpush.msra.mxu0 0.0
        %584 = vmatpush.msra.mxu0 0.0
        %v585 = vand.u32 %v325, 4294901760
        %586 = vmatpush.msra.mxu0 %v585
        %v587 = vand.u32 %v290, 4294901760
        %588 = vmatpush.msra.mxu0 %v587
        %v589 = vand.u32 %v289, 4294901760
        %590 = vmatpush.msra.mxu0 %v589
        %v591 = vand.u32 %v294, 4294901760
        %v592 = vsub.f32 %v294, %v591
        %v593 = vand.u32 %v592, 4294901760
        %594 = vmatmul.f32.gmra.mxu0 %v593
        %v595 = vpop.f32.mrf.mxu0
        %v596 = vadd.f32 %v525, %v595
        %v597 = vand.u32 %v297, 4294901760
        %v598 = vsub.f32 %v297, %v597
        %v599 = vand.u32 %v598, 4294901760
        %600 = vmatmul.f32.gmra.mxu0 %v599
        %v601 = vpop.f32.mrf.mxu0
        %v602 = vadd.f32 %v530, %v601
        %v603 = vand.u32 %v300, 4294901760
        %v604 = vsub.f32 %v300, %v603
        %v605 = vand.u32 %v604, 4294901760
        %606 = vmatmul.f32.gmra.mxu0 %v605
        %v607 = vpop.f32.mrf.mxu0
        %v608 = vadd.f32 %v535, %v607
        %v609 = vand.u32 %v303, 4294901760
        %v610 = vsub.f32 %v303, %v609
        %v611 = vand.u32 %v610, 4294901760
        %612 = vmatmul.f32.gmra.mxu0 %v611
        %v613 = vpop.f32.mrf.mxu0
        %v614 = vadd.f32 %v540, %v613
        %v615 = vand.u32 %v306, 4294901760
        %v616 = vsub.f32 %v306, %v615
        %v617 = vand.u32 %v616, 4294901760
        %618 = vmatmul.f32.gmra.mxu0 %v617
        %v619 = vpop.f32.mrf.mxu0
        %v620 = vadd.f32 %v545, %v619
        %v621 = vand.u32 %v309, 4294901760
        %v622 = vsub.f32 %v309, %v621
        %v623 = vand.u32 %v622, 4294901760
        %624 = vmatmul.f32.gmra.mxu0 %v623
        %v625 = vpop.f32.mrf.mxu0
        %v626 = vadd.f32 %v550, %v625
        %v627 = vand.u32 %v312, 4294901760
        %v628 = vsub.f32 %v312, %v627
        %v629 = vand.u32 %v628, 4294901760
        %630 = vmatmul.f32.gmra.mxu0 %v629
        %v631 = vpop.f32.mrf.mxu0
        %v632 = vadd.f32 %v555, %v631
        %v633 = vand.u32 %v315, 4294901760
        %v634 = vsub.f32 %v315, %v633
        %v635 = vand.u32 %v634, 4294901760
        %636 = vmatmul.f32.gmra.mxu0 %v635
        %v637 = vpop.f32.mrf.mxu0
        %v638 = vadd.f32 %v560, %v637
        %v639 = vand.u32 %v318, 4294901760
        %v640 = vsub.f32 %v318, %v639
        %v641 = vand.u32 %v640, 4294901760
        %642 = vmatmul.f32.gmra.mxu0 %v641
        %v643 = vpop.f32.mrf.mxu0
        %v644 = vadd.f32 %v565, %v643
        %v645 = vand.u32 %v321, 4294901760
        %v646 = vsub.f32 %v321, %v645
        %v647 = vand.u32 %v646, 4294901760
        %648 = vmatmul.f32.gmra.mxu0 %v647
        %v649 = vpop.f32.mrf.mxu0
        %v650 = vadd.f32 %v570, %v649
        %651 = vdwg.mxu0
        %652 = vmatpush.msra.mxu0 0.0
        %653 = vmatpush.msra.mxu0 0.0
        %654 = vmatpush.msra.mxu0 0.0
        %655 = vmatpush.msra.mxu0 0.0
        %656 = vmatpush.msra.mxu0 0.0
        %657 = vmatpush.msra.mxu0 0.0
        %658 = vmatpush.msra.mxu0 0.0
        %659 = vmatpush.msra.mxu0 0.0
        %660 = vmatpush.msra.mxu0 0.0
        %661 = vmatpush.msra.mxu0 0.0
        %662 = vmatpush.msra.mxu0 0.0
        %663 = vmatpush.msra.mxu0 0.0
        %664 = vmatpush.msra.mxu0 0.0
        %v665 = vand.u32 %v325, 4294901760
        %v666 = vsub.f32 %v325, %v665
        %v667 = vand.u32 %v666, 4294901760
        %668 = vmatpush.msra.mxu0 %v667
        %v669 = vand.u32 %v290, 4294901760
        %v670 = vsub.f32 %v290, %v669
        %v671 = vand.u32 %v670, 4294901760
        %672 = vmatpush.msra.mxu0 %v671
        %v673 = vand.u32 %v289, 4294901760
        %v674 = vsub.f32 %v289, %v673
        %v675 = vand.u32 %v674, 4294901760
        %676 = vmatpush.msra.mxu0 %v675
        %v677 = vand.u32 %v294, 4294901760
        %678 = vmatmul.f32.gmra.mxu0 %v677
        %v679 = vpop.f32.mrf.mxu0
        %v680 = vadd.f32 %v596, %v679
        %v681 = vand.u32 %v297, 4294901760
        %682 = vmatmul.f32.gmra.mxu0 %v681
        %v683 = vpop.f32.mrf.mxu0
        %v684 = vadd.f32 %v602, %v683
        %v685 = vand.u32 %v300, 4294901760
        %686 = vmatmul.f32.gmra.mxu0 %v685
        %v687 = vpop.f32.mrf.mxu0
        %v688 = vadd.f32 %v608, %v687
        %v689 = vand.u32 %v303, 4294901760
        %690 = vmatmul.f32.gmra.mxu0 %v689
        %v691 = vpop.f32.mrf.mxu0
        %v692 = vadd.f32 %v614, %v691
        %v693 = vand.u32 %v306, 4294901760
        %694 = vmatmul.f32.gmra.mxu0 %v693
        %v695 = vpop.f32.mrf.mxu0
        %v696 = vadd.f32 %v620, %v695
        %v697 = vand.u32 %v309, 4294901760
        %698 = vmatmul.f32.gmra.mxu0 %v697
        %v699 = vpop.f32.mrf.mxu0
        %v700 = vadd.f32 %v626, %v699
        %v701 = vand.u32 %v312, 4294901760
        %702 = vmatmul.f32.gmra.mxu0 %v701
        %v703 = vpop.f32.mrf.mxu0
        %v704 = vadd.f32 %v632, %v703
        %v705 = vand.u32 %v315, 4294901760
        %706 = vmatmul.f32.gmra.mxu0 %v705
        %v707 = vpop.f32.mrf.mxu0
        %v708 = vadd.f32 %v638, %v707
        %v709 = vand.u32 %v318, 4294901760
        %710 = vmatmul.f32.gmra.mxu0 %v709
        %v711 = vpop.f32.mrf.mxu0
        %v712 = vadd.f32 %v644, %v711
        %v713 = vand.u32 %v321, 4294901760
        %714 = vmatmul.f32.gmra.mxu0 %v713
        %v715 = vpop.f32.mrf.mxu0
        %v716 = vadd.f32 %v650, %v715
        %717 = vdwg.mxu0
        %718 = vmatpush.msra.mxu0 0.0
        %719 = vmatpush.msra.mxu0 0.0
        %720 = vmatpush.msra.mxu0 0.0
        %721 = vmatpush.msra.mxu0 0.0
        %722 = vmatpush.msra.mxu0 0.0
        %723 = vmatpush.msra.mxu0 0.0
        %724 = vmatpush.msra.mxu0 0.0
        %725 = vmatpush.msra.mxu0 0.0
        %726 = vmatpush.msra.mxu0 0.0
        %727 = vmatpush.msra.mxu0 0.0
        %728 = vmatpush.msra.mxu0 0.0
        %729 = vmatpush.msra.mxu0 0.0
        %730 = vmatpush.msra.mxu0 0.0
        %v731 = vand.u32 %v325, 4294901760
        %732 = vmatpush.msra.mxu0 %v731
        %v733 = vand.u32 %v290, 4294901760
        %734 = vmatpush.msra.mxu0 %v733
        %v735 = vand.u32 %v289, 4294901760
        %736 = vmatpush.msra.mxu0 %v735
        %v737 = vand.u32 %v294, 4294901760
        %738 = vmatmul.f32.gmra.mxu0 %v737
        %v739 = vpop.f32.mrf.mxu0
        %v740 = vadd.f32 %v680, %v739
        %v741 = vand.u32 %v297, 4294901760
        %742 = vmatmul.f32.gmra.mxu0 %v741
        %v743 = vpop.f32.mrf.mxu0
        %v744 = vadd.f32 %v684, %v743
        %v745 = vand.u32 %v300, 4294901760
        %746 = vmatmul.f32.gmra.mxu0 %v745
        %v747 = vpop.f32.mrf.mxu0
        %v748 = vadd.f32 %v688, %v747
        %v749 = vand.u32 %v303, 4294901760
        %750 = vmatmul.f32.gmra.mxu0 %v749
        %v751 = vpop.f32.mrf.mxu0
        %v752 = vadd.f32 %v692, %v751
        %v753 = vand.u32 %v306, 4294901760
        %754 = vmatmul.f32.gmra.mxu0 %v753
        %v755 = vpop.f32.mrf.mxu0
        %v756 = vadd.f32 %v696, %v755
        %v757 = vand.u32 %v309, 4294901760
        %758 = vmatmul.f32.gmra.mxu0 %v757
        %v759 = vpop.f32.mrf.mxu0
        %v760 = vadd.f32 %v700, %v759
        %v761 = vand.u32 %v312, 4294901760
        %762 = vmatmul.f32.gmra.mxu0 %v761
        %v763 = vpop.f32.mrf.mxu0
        %v764 = vadd.f32 %v704, %v763
        %v765 = vand.u32 %v315, 4294901760
        %766 = vmatmul.f32.gmra.mxu0 %v765
        %v767 = vpop.f32.mrf.mxu0
        %v768 = vadd.f32 %v708, %v767
        %v769 = vand.u32 %v318, 4294901760
        %770 = vmatmul.f32.gmra.mxu0 %v769
        %v771 = vpop.f32.mrf.mxu0
        %v772 = vadd.f32 %v712, %v771
        %v773 = vand.u32 %v321, 4294901760
        %774 = vmatmul.f32.gmra.mxu0 %v773
        %v775 = vpop.f32.mrf.mxu0
        %v776 = vadd.f32 %v716, %v775
        %777 = vdwg.mxu0
        %vm778 = vcmask 719872
        %v780 = vsel %vm778, %v258, 0
        %v783 = vsel %vm778, %v259, 0
        %v786 = vsel %vm778, %v260, 0
        %v789 = vsel %vm778, %v261, 0
        %v792 = vsel %vm778, %v262, 0
        %v795 = vsel %vm778, %v263, 0
        %v798 = vsel %vm778, %v264, 0
        %v801 = vsel %vm778, %v265, 0
        %v804 = vsel %vm778, %v266, 0
        %v807 = vsel %vm778, %v267, 0
        %809 = vmatpush.msra.mxu0 0.0
        %810 = vmatpush.msra.mxu0 0.0
        %811 = vmatpush.msra.mxu0 0.0
        %812 = vmatpush.msra.mxu0 0.0
        %813 = vmatpush.msra.mxu0 0.0
        %v814 = vand.u32 %v278, 4294901760
        %815 = vmatpush.msra.mxu0 %v814
        %v816 = vand.u32 %v277, 4294901760
        %817 = vmatpush.msra.mxu0 %v816
        %v818 = vand.u32 %v276, 4294901760
        %819 = vmatpush.msra.mxu0 %v818
        %v820 = vand.u32 %v275, 4294901760
        %821 = vmatpush.msra.mxu0 %v820
        %v822 = vand.u32 %v274, 4294901760
        %823 = vmatpush.msra.mxu0 %v822
        %v824 = vand.u32 %v273, 4294901760
        %825 = vmatpush.msra.mxu0 %v824
        %v826 = vand.u32 %v272, 4294901760
        %827 = vmatpush.msra.mxu0 %v826
        %v828 = vand.u32 %v271, 4294901760
        %829 = vmatpush.msra.mxu0 %v828
        %v830 = vand.u32 %v270, 4294901760
        %831 = vmatpush.msra.mxu0 %v830
        %v832 = vand.u32 %v269, 4294901760
        %833 = vmatpush.msra.mxu0 %v832
        %v834 = vand.u32 %v268, 4294901760
        %835 = vmatpush.msra.mxu0 %v834
        %v836 = vand.u32 %v780, 4294901760
        %v837 = vsub.f32 %v780, %v836
        %v838 = vand.u32 %v837, 4294901760
        %v839 = vsub.f32 %v837, %v838
        %v840 = vand.u32 %v839, 4294901760
        %841 = vmatmul.f32.gmra.mxu0 %v840
        %v842 = vpop.f32.mrf.mxu0
        %v843 = vadd.f32 %v740, %v842
        %v844 = vand.u32 %v783, 4294901760
        %v845 = vsub.f32 %v783, %v844
        %v846 = vand.u32 %v845, 4294901760
        %v847 = vsub.f32 %v845, %v846
        %v848 = vand.u32 %v847, 4294901760
        %849 = vmatmul.f32.gmra.mxu0 %v848
        %v850 = vpop.f32.mrf.mxu0
        %v851 = vadd.f32 %v744, %v850
        %v852 = vand.u32 %v786, 4294901760
        %v853 = vsub.f32 %v786, %v852
        %v854 = vand.u32 %v853, 4294901760
        %v855 = vsub.f32 %v853, %v854
        %v856 = vand.u32 %v855, 4294901760
        %857 = vmatmul.f32.gmra.mxu0 %v856
        %v858 = vpop.f32.mrf.mxu0
        %v859 = vadd.f32 %v748, %v858
        %v860 = vand.u32 %v789, 4294901760
        %v861 = vsub.f32 %v789, %v860
        %v862 = vand.u32 %v861, 4294901760
        %v863 = vsub.f32 %v861, %v862
        %v864 = vand.u32 %v863, 4294901760
        %865 = vmatmul.f32.gmra.mxu0 %v864
        %v866 = vpop.f32.mrf.mxu0
        %v867 = vadd.f32 %v752, %v866
        %v868 = vand.u32 %v792, 4294901760
        %v869 = vsub.f32 %v792, %v868
        %v870 = vand.u32 %v869, 4294901760
        %v871 = vsub.f32 %v869, %v870
        %v872 = vand.u32 %v871, 4294901760
        %873 = vmatmul.f32.gmra.mxu0 %v872
        %v874 = vpop.f32.mrf.mxu0
        %v875 = vadd.f32 %v756, %v874
        %v876 = vand.u32 %v795, 4294901760
        %v877 = vsub.f32 %v795, %v876
        %v878 = vand.u32 %v877, 4294901760
        %v879 = vsub.f32 %v877, %v878
        %v880 = vand.u32 %v879, 4294901760
        %881 = vmatmul.f32.gmra.mxu0 %v880
        %v882 = vpop.f32.mrf.mxu0
        %v883 = vadd.f32 %v760, %v882
        %v884 = vand.u32 %v798, 4294901760
        %v885 = vsub.f32 %v798, %v884
        %v886 = vand.u32 %v885, 4294901760
        %v887 = vsub.f32 %v885, %v886
        %v888 = vand.u32 %v887, 4294901760
        %889 = vmatmul.f32.gmra.mxu0 %v888
        %v890 = vpop.f32.mrf.mxu0
        %v891 = vadd.f32 %v764, %v890
        %v892 = vand.u32 %v801, 4294901760
        %v893 = vsub.f32 %v801, %v892
        %v894 = vand.u32 %v893, 4294901760
        %v895 = vsub.f32 %v893, %v894
        %v896 = vand.u32 %v895, 4294901760
        %897 = vmatmul.f32.gmra.mxu0 %v896
        %v898 = vpop.f32.mrf.mxu0
        %v899 = vadd.f32 %v768, %v898
        %v900 = vand.u32 %v804, 4294901760
        %v901 = vsub.f32 %v804, %v900
        %v902 = vand.u32 %v901, 4294901760
        %v903 = vsub.f32 %v901, %v902
        %v904 = vand.u32 %v903, 4294901760
        %905 = vmatmul.f32.gmra.mxu0 %v904
        %v906 = vpop.f32.mrf.mxu0
        %v907 = vadd.f32 %v772, %v906
        %v908 = vand.u32 %v807, 4294901760
        %v909 = vsub.f32 %v807, %v908
        %v910 = vand.u32 %v909, 4294901760
        %v911 = vsub.f32 %v909, %v910
        %v912 = vand.u32 %v911, 4294901760
        %913 = vmatmul.f32.gmra.mxu0 %v912
        %v914 = vpop.f32.mrf.mxu0
        %v915 = vadd.f32 %v776, %v914
        %916 = vdwg.mxu0
        %917 = vmatpush.msra.mxu0 0.0
        %918 = vmatpush.msra.mxu0 0.0
        %919 = vmatpush.msra.mxu0 0.0
        %920 = vmatpush.msra.mxu0 0.0
        %921 = vmatpush.msra.mxu0 0.0
        %v922 = vand.u32 %v278, 4294901760
        %v923 = vsub.f32 %v278, %v922
        %v924 = vand.u32 %v923, 4294901760
        %v925 = vsub.f32 %v923, %v924
        %v926 = vand.u32 %v925, 4294901760
        %927 = vmatpush.msra.mxu0 %v926
        %v928 = vand.u32 %v277, 4294901760
        %v929 = vsub.f32 %v277, %v928
        %v930 = vand.u32 %v929, 4294901760
        %v931 = vsub.f32 %v929, %v930
        %v932 = vand.u32 %v931, 4294901760
        %933 = vmatpush.msra.mxu0 %v932
        %v934 = vand.u32 %v276, 4294901760
        %v935 = vsub.f32 %v276, %v934
        %v936 = vand.u32 %v935, 4294901760
        %v937 = vsub.f32 %v935, %v936
        %v938 = vand.u32 %v937, 4294901760
        %939 = vmatpush.msra.mxu0 %v938
        %v940 = vand.u32 %v275, 4294901760
        %v941 = vsub.f32 %v275, %v940
        %v942 = vand.u32 %v941, 4294901760
        %v943 = vsub.f32 %v941, %v942
        %v944 = vand.u32 %v943, 4294901760
        %945 = vmatpush.msra.mxu0 %v944
        %v946 = vand.u32 %v274, 4294901760
        %v947 = vsub.f32 %v274, %v946
        %v948 = vand.u32 %v947, 4294901760
        %v949 = vsub.f32 %v947, %v948
        %v950 = vand.u32 %v949, 4294901760
        %951 = vmatpush.msra.mxu0 %v950
        %v952 = vand.u32 %v273, 4294901760
        %v953 = vsub.f32 %v273, %v952
        %v954 = vand.u32 %v953, 4294901760
        %v955 = vsub.f32 %v953, %v954
        %v956 = vand.u32 %v955, 4294901760
        %957 = vmatpush.msra.mxu0 %v956
        %v958 = vand.u32 %v272, 4294901760
        %v959 = vsub.f32 %v272, %v958
        %v960 = vand.u32 %v959, 4294901760
        %v961 = vsub.f32 %v959, %v960
        %v962 = vand.u32 %v961, 4294901760
        %963 = vmatpush.msra.mxu0 %v962
        %v964 = vand.u32 %v271, 4294901760
        %v965 = vsub.f32 %v271, %v964
        %v966 = vand.u32 %v965, 4294901760
        %v967 = vsub.f32 %v965, %v966
        %v968 = vand.u32 %v967, 4294901760
        %969 = vmatpush.msra.mxu0 %v968
        %v970 = vand.u32 %v270, 4294901760
        %v971 = vsub.f32 %v270, %v970
        %v972 = vand.u32 %v971, 4294901760
        %v973 = vsub.f32 %v971, %v972
        %v974 = vand.u32 %v973, 4294901760
        %975 = vmatpush.msra.mxu0 %v974
        %v976 = vand.u32 %v269, 4294901760
        %v977 = vsub.f32 %v269, %v976
        %v978 = vand.u32 %v977, 4294901760
        %v979 = vsub.f32 %v977, %v978
        %v980 = vand.u32 %v979, 4294901760
        %981 = vmatpush.msra.mxu0 %v980
        %v982 = vand.u32 %v268, 4294901760
        %v983 = vsub.f32 %v268, %v982
        %v984 = vand.u32 %v983, 4294901760
        %v985 = vsub.f32 %v983, %v984
        %v986 = vand.u32 %v985, 4294901760
        %987 = vmatpush.msra.mxu0 %v986
        %v988 = vand.u32 %v780, 4294901760
        %989 = vmatmul.f32.gmra.mxu0 %v988
        %v990 = vpop.f32.mrf.mxu0
        %v991 = vadd.f32 %v843, %v990
        %v992 = vand.u32 %v783, 4294901760
        %993 = vmatmul.f32.gmra.mxu0 %v992
        %v994 = vpop.f32.mrf.mxu0
        %v995 = vadd.f32 %v851, %v994
        %v996 = vand.u32 %v786, 4294901760
        %997 = vmatmul.f32.gmra.mxu0 %v996
        %v998 = vpop.f32.mrf.mxu0
        %v999 = vadd.f32 %v859, %v998
        %v1000 = vand.u32 %v789, 4294901760
        %1001 = vmatmul.f32.gmra.mxu0 %v1000
        %v1002 = vpop.f32.mrf.mxu0
        %v1003 = vadd.f32 %v867, %v1002
        %v1004 = vand.u32 %v792, 4294901760
        %1005 = vmatmul.f32.gmra.mxu0 %v1004
        %v1006 = vpop.f32.mrf.mxu0
        %v1007 = vadd.f32 %v875, %v1006
        %v1008 = vand.u32 %v795, 4294901760
        %1009 = vmatmul.f32.gmra.mxu0 %v1008
        %v1010 = vpop.f32.mrf.mxu0
        %v1011 = vadd.f32 %v883, %v1010
        %v1012 = vand.u32 %v798, 4294901760
        %1013 = vmatmul.f32.gmra.mxu0 %v1012
        %v1014 = vpop.f32.mrf.mxu0
        %v1015 = vadd.f32 %v891, %v1014
        %v1016 = vand.u32 %v801, 4294901760
        %1017 = vmatmul.f32.gmra.mxu0 %v1016
        %v1018 = vpop.f32.mrf.mxu0
        %v1019 = vadd.f32 %v899, %v1018
        %v1020 = vand.u32 %v804, 4294901760
        %1021 = vmatmul.f32.gmra.mxu0 %v1020
        %v1022 = vpop.f32.mrf.mxu0
        %v1023 = vadd.f32 %v907, %v1022
        %v1024 = vand.u32 %v807, 4294901760
        %1025 = vmatmul.f32.gmra.mxu0 %v1024
        %v1026 = vpop.f32.mrf.mxu0
        %v1027 = vadd.f32 %v915, %v1026
        %1028 = vdwg.mxu0
        %1029 = vmatpush.msra.mxu0 0.0
        %1030 = vmatpush.msra.mxu0 0.0
        %1031 = vmatpush.msra.mxu0 0.0
        %1032 = vmatpush.msra.mxu0 0.0
        %1033 = vmatpush.msra.mxu0 0.0
        %v1034 = vand.u32 %v278, 4294901760
        %v1035 = vsub.f32 %v278, %v1034
        %1036 = vmatpush.msra.mxu0 %v1035
        %v1037 = vand.u32 %v277, 4294901760
        %v1038 = vsub.f32 %v277, %v1037
        %1039 = vmatpush.msra.mxu0 %v1038
        %v1040 = vand.u32 %v276, 4294901760
        %v1041 = vsub.f32 %v276, %v1040
        %1042 = vmatpush.msra.mxu0 %v1041
        %v1043 = vand.u32 %v275, 4294901760
        %v1044 = vsub.f32 %v275, %v1043
        %1045 = vmatpush.msra.mxu0 %v1044
        %v1046 = vand.u32 %v274, 4294901760
        %v1047 = vsub.f32 %v274, %v1046
        %1048 = vmatpush.msra.mxu0 %v1047
        %v1049 = vand.u32 %v273, 4294901760
        %v1050 = vsub.f32 %v273, %v1049
        %1051 = vmatpush.msra.mxu0 %v1050
        %v1052 = vand.u32 %v272, 4294901760
        %v1053 = vsub.f32 %v272, %v1052
        %1054 = vmatpush.msra.mxu0 %v1053
        %v1055 = vand.u32 %v271, 4294901760
        %v1056 = vsub.f32 %v271, %v1055
        %1057 = vmatpush.msra.mxu0 %v1056
        %v1058 = vand.u32 %v270, 4294901760
        %v1059 = vsub.f32 %v270, %v1058
        %1060 = vmatpush.msra.mxu0 %v1059
        %v1061 = vand.u32 %v269, 4294901760
        %v1062 = vsub.f32 %v269, %v1061
        %1063 = vmatpush.msra.mxu0 %v1062
        %v1064 = vand.u32 %v268, 4294901760
        %v1065 = vsub.f32 %v268, %v1064
        %1066 = vmatpush.msra.mxu0 %v1065
        %v1067 = vand.u32 %v780, 4294901760
        %v1068 = vsub.f32 %v780, %v1067
        %1069 = vmatmul.f32.gmra.mxu0 %v1068
        %v1070 = vpop.f32.mrf.mxu0
        %v1071 = vadd.f32 %v991, %v1070
        %v1072 = vand.u32 %v783, 4294901760
        %v1073 = vsub.f32 %v783, %v1072
        %1074 = vmatmul.f32.gmra.mxu0 %v1073
        %v1075 = vpop.f32.mrf.mxu0
        %v1076 = vadd.f32 %v995, %v1075
        %v1077 = vand.u32 %v786, 4294901760
        %v1078 = vsub.f32 %v786, %v1077
        %1079 = vmatmul.f32.gmra.mxu0 %v1078
        %v1080 = vpop.f32.mrf.mxu0
        %v1081 = vadd.f32 %v999, %v1080
        %v1082 = vand.u32 %v789, 4294901760
        %v1083 = vsub.f32 %v789, %v1082
        %1084 = vmatmul.f32.gmra.mxu0 %v1083
        %v1085 = vpop.f32.mrf.mxu0
        %v1086 = vadd.f32 %v1003, %v1085
        %v1087 = vand.u32 %v792, 4294901760
        %v1088 = vsub.f32 %v792, %v1087
        %1089 = vmatmul.f32.gmra.mxu0 %v1088
        %v1090 = vpop.f32.mrf.mxu0
        %v1091 = vadd.f32 %v1007, %v1090
        %v1092 = vand.u32 %v795, 4294901760
        %v1093 = vsub.f32 %v795, %v1092
        %1094 = vmatmul.f32.gmra.mxu0 %v1093
        %v1095 = vpop.f32.mrf.mxu0
        %v1096 = vadd.f32 %v1011, %v1095
        %v1097 = vand.u32 %v798, 4294901760
        %v1098 = vsub.f32 %v798, %v1097
        %1099 = vmatmul.f32.gmra.mxu0 %v1098
        %v1100 = vpop.f32.mrf.mxu0
        %v1101 = vadd.f32 %v1015, %v1100
        %v1102 = vand.u32 %v801, 4294901760
        %v1103 = vsub.f32 %v801, %v1102
        %1104 = vmatmul.f32.gmra.mxu0 %v1103
        %v1105 = vpop.f32.mrf.mxu0
        %v1106 = vadd.f32 %v1019, %v1105
        %v1107 = vand.u32 %v804, 4294901760
        %v1108 = vsub.f32 %v804, %v1107
        %1109 = vmatmul.f32.gmra.mxu0 %v1108
        %v1110 = vpop.f32.mrf.mxu0
        %v1111 = vadd.f32 %v1023, %v1110
        %v1112 = vand.u32 %v807, 4294901760
        %v1113 = vsub.f32 %v807, %v1112
        %1114 = vmatmul.f32.gmra.mxu0 %v1113
        %v1115 = vpop.f32.mrf.mxu0
        %v1116 = vadd.f32 %v1027, %v1115
        %1117 = vdwg.mxu0
        %1118 = vmatpush.msra.mxu0 0.0
        %1119 = vmatpush.msra.mxu0 0.0
        %1120 = vmatpush.msra.mxu0 0.0
        %1121 = vmatpush.msra.mxu0 0.0
        %1122 = vmatpush.msra.mxu0 0.0
        %v1123 = vand.u32 %v278, 4294901760
        %1124 = vmatpush.msra.mxu0 %v1123
        %v1125 = vand.u32 %v277, 4294901760
        %1126 = vmatpush.msra.mxu0 %v1125
        %v1127 = vand.u32 %v276, 4294901760
        %1128 = vmatpush.msra.mxu0 %v1127
        %v1129 = vand.u32 %v275, 4294901760
        %1130 = vmatpush.msra.mxu0 %v1129
        %v1131 = vand.u32 %v274, 4294901760
        %1132 = vmatpush.msra.mxu0 %v1131
        %v1133 = vand.u32 %v273, 4294901760
        %1134 = vmatpush.msra.mxu0 %v1133
        %v1135 = vand.u32 %v272, 4294901760
        %1136 = vmatpush.msra.mxu0 %v1135
        %v1137 = vand.u32 %v271, 4294901760
        %1138 = vmatpush.msra.mxu0 %v1137
        %v1139 = vand.u32 %v270, 4294901760
        %1140 = vmatpush.msra.mxu0 %v1139
        %v1141 = vand.u32 %v269, 4294901760
        %1142 = vmatpush.msra.mxu0 %v1141
        %v1143 = vand.u32 %v268, 4294901760
        %1144 = vmatpush.msra.mxu0 %v1143
        %v1145 = vand.u32 %v780, 4294901760
        %v1146 = vsub.f32 %v780, %v1145
        %v1147 = vand.u32 %v1146, 4294901760
        %1148 = vmatmul.f32.gmra.mxu0 %v1147
        %v1149 = vpop.f32.mrf.mxu0
        %v1150 = vadd.f32 %v1071, %v1149
        %v1151 = vand.u32 %v783, 4294901760
        %v1152 = vsub.f32 %v783, %v1151
        %v1153 = vand.u32 %v1152, 4294901760
        %1154 = vmatmul.f32.gmra.mxu0 %v1153
        %v1155 = vpop.f32.mrf.mxu0
        %v1156 = vadd.f32 %v1076, %v1155
        %v1157 = vand.u32 %v786, 4294901760
        %v1158 = vsub.f32 %v786, %v1157
        %v1159 = vand.u32 %v1158, 4294901760
        %1160 = vmatmul.f32.gmra.mxu0 %v1159
        %v1161 = vpop.f32.mrf.mxu0
        %v1162 = vadd.f32 %v1081, %v1161
        %v1163 = vand.u32 %v789, 4294901760
        %v1164 = vsub.f32 %v789, %v1163
        %v1165 = vand.u32 %v1164, 4294901760
        %1166 = vmatmul.f32.gmra.mxu0 %v1165
        %v1167 = vpop.f32.mrf.mxu0
        %v1168 = vadd.f32 %v1086, %v1167
        %v1169 = vand.u32 %v792, 4294901760
        %v1170 = vsub.f32 %v792, %v1169
        %v1171 = vand.u32 %v1170, 4294901760
        %1172 = vmatmul.f32.gmra.mxu0 %v1171
        %v1173 = vpop.f32.mrf.mxu0
        %v1174 = vadd.f32 %v1091, %v1173
        %v1175 = vand.u32 %v795, 4294901760
        %v1176 = vsub.f32 %v795, %v1175
        %v1177 = vand.u32 %v1176, 4294901760
        %1178 = vmatmul.f32.gmra.mxu0 %v1177
        %v1179 = vpop.f32.mrf.mxu0
        %v1180 = vadd.f32 %v1096, %v1179
        %v1181 = vand.u32 %v798, 4294901760
        %v1182 = vsub.f32 %v798, %v1181
        %v1183 = vand.u32 %v1182, 4294901760
        %1184 = vmatmul.f32.gmra.mxu0 %v1183
        %v1185 = vpop.f32.mrf.mxu0
        %v1186 = vadd.f32 %v1101, %v1185
        %v1187 = vand.u32 %v801, 4294901760
        %v1188 = vsub.f32 %v801, %v1187
        %v1189 = vand.u32 %v1188, 4294901760
        %1190 = vmatmul.f32.gmra.mxu0 %v1189
        %v1191 = vpop.f32.mrf.mxu0
        %v1192 = vadd.f32 %v1106, %v1191
        %v1193 = vand.u32 %v804, 4294901760
        %v1194 = vsub.f32 %v804, %v1193
        %v1195 = vand.u32 %v1194, 4294901760
        %1196 = vmatmul.f32.gmra.mxu0 %v1195
        %v1197 = vpop.f32.mrf.mxu0
        %v1198 = vadd.f32 %v1111, %v1197
        %v1199 = vand.u32 %v807, 4294901760
        %v1200 = vsub.f32 %v807, %v1199
        %v1201 = vand.u32 %v1200, 4294901760
        %1202 = vmatmul.f32.gmra.mxu0 %v1201
        %v1203 = vpop.f32.mrf.mxu0
        %v1204 = vadd.f32 %v1116, %v1203
        %1205 = vdwg.mxu0
        %1206 = vmatpush.msra.mxu0 0.0
        %1207 = vmatpush.msra.mxu0 0.0
        %1208 = vmatpush.msra.mxu0 0.0
        %1209 = vmatpush.msra.mxu0 0.0
        %1210 = vmatpush.msra.mxu0 0.0
        %v1211 = vand.u32 %v278, 4294901760
        %v1212 = vsub.f32 %v278, %v1211
        %v1213 = vand.u32 %v1212, 4294901760
        %1214 = vmatpush.msra.mxu0 %v1213
        %v1215 = vand.u32 %v277, 4294901760
        %v1216 = vsub.f32 %v277, %v1215
        %v1217 = vand.u32 %v1216, 4294901760
        %1218 = vmatpush.msra.mxu0 %v1217
        %v1219 = vand.u32 %v276, 4294901760
        %v1220 = vsub.f32 %v276, %v1219
        %v1221 = vand.u32 %v1220, 4294901760
        %1222 = vmatpush.msra.mxu0 %v1221
        %v1223 = vand.u32 %v275, 4294901760
        %v1224 = vsub.f32 %v275, %v1223
        %v1225 = vand.u32 %v1224, 4294901760
        %1226 = vmatpush.msra.mxu0 %v1225
        %v1227 = vand.u32 %v274, 4294901760
        %v1228 = vsub.f32 %v274, %v1227
        %v1229 = vand.u32 %v1228, 4294901760
        %1230 = vmatpush.msra.mxu0 %v1229
        %v1231 = vand.u32 %v273, 4294901760
        %v1232 = vsub.f32 %v273, %v1231
        %v1233 = vand.u32 %v1232, 4294901760
        %1234 = vmatpush.msra.mxu0 %v1233
        %v1235 = vand.u32 %v272, 4294901760
        %v1236 = vsub.f32 %v272, %v1235
        %v1237 = vand.u32 %v1236, 4294901760
        %1238 = vmatpush.msra.mxu0 %v1237
        %v1239 = vand.u32 %v271, 4294901760
        %v1240 = vsub.f32 %v271, %v1239
        %v1241 = vand.u32 %v1240, 4294901760
        %1242 = vmatpush.msra.mxu0 %v1241
        %v1243 = vand.u32 %v270, 4294901760
        %v1244 = vsub.f32 %v270, %v1243
        %v1245 = vand.u32 %v1244, 4294901760
        %1246 = vmatpush.msra.mxu0 %v1245
        %v1247 = vand.u32 %v269, 4294901760
        %v1248 = vsub.f32 %v269, %v1247
        %v1249 = vand.u32 %v1248, 4294901760
        %1250 = vmatpush.msra.mxu0 %v1249
        %v1251 = vand.u32 %v268, 4294901760
        %v1252 = vsub.f32 %v268, %v1251
        %v1253 = vand.u32 %v1252, 4294901760
        %1254 = vmatpush.msra.mxu0 %v1253
        %v1255 = vand.u32 %v780, 4294901760
        %1256 = vmatmul.f32.gmra.mxu0 %v1255
        %v1257 = vpop.f32.mrf.mxu0
        %v1258 = vadd.f32 %v1150, %v1257
        %v1259 = vand.u32 %v783, 4294901760
        %1260 = vmatmul.f32.gmra.mxu0 %v1259
        %v1261 = vpop.f32.mrf.mxu0
        %v1262 = vadd.f32 %v1156, %v1261
        %v1263 = vand.u32 %v786, 4294901760
        %1264 = vmatmul.f32.gmra.mxu0 %v1263
        %v1265 = vpop.f32.mrf.mxu0
        %v1266 = vadd.f32 %v1162, %v1265
        %v1267 = vand.u32 %v789, 4294901760
        %1268 = vmatmul.f32.gmra.mxu0 %v1267
        %v1269 = vpop.f32.mrf.mxu0
        %v1270 = vadd.f32 %v1168, %v1269
        %v1271 = vand.u32 %v792, 4294901760
        %1272 = vmatmul.f32.gmra.mxu0 %v1271
        %v1273 = vpop.f32.mrf.mxu0
        %v1274 = vadd.f32 %v1174, %v1273
        %v1275 = vand.u32 %v795, 4294901760
        %1276 = vmatmul.f32.gmra.mxu0 %v1275
        %v1277 = vpop.f32.mrf.mxu0
        %v1278 = vadd.f32 %v1180, %v1277
        %v1279 = vand.u32 %v798, 4294901760
        %1280 = vmatmul.f32.gmra.mxu0 %v1279
        %v1281 = vpop.f32.mrf.mxu0
        %v1282 = vadd.f32 %v1186, %v1281
        %v1283 = vand.u32 %v801, 4294901760
        %1284 = vmatmul.f32.gmra.mxu0 %v1283
        %v1285 = vpop.f32.mrf.mxu0
        %v1286 = vadd.f32 %v1192, %v1285
        %v1287 = vand.u32 %v804, 4294901760
        %1288 = vmatmul.f32.gmra.mxu0 %v1287
        %v1289 = vpop.f32.mrf.mxu0
        %v1290 = vadd.f32 %v1198, %v1289
        %v1291 = vand.u32 %v807, 4294901760
        %1292 = vmatmul.f32.gmra.mxu0 %v1291
        %v1293 = vpop.f32.mrf.mxu0
        %v1294 = vadd.f32 %v1204, %v1293
        %1295 = vdwg.mxu0
        %1296 = vmatpush.msra.mxu0 0.0
        %1297 = vmatpush.msra.mxu0 0.0
        %1298 = vmatpush.msra.mxu0 0.0
        %1299 = vmatpush.msra.mxu0 0.0
        %1300 = vmatpush.msra.mxu0 0.0
        %v1301 = vand.u32 %v278, 4294901760
        %1302 = vmatpush.msra.mxu0 %v1301
        %v1303 = vand.u32 %v277, 4294901760
        %1304 = vmatpush.msra.mxu0 %v1303
        %v1305 = vand.u32 %v276, 4294901760
        %1306 = vmatpush.msra.mxu0 %v1305
        %v1307 = vand.u32 %v275, 4294901760
        %1308 = vmatpush.msra.mxu0 %v1307
        %v1309 = vand.u32 %v274, 4294901760
        %1310 = vmatpush.msra.mxu0 %v1309
        %v1311 = vand.u32 %v273, 4294901760
        %1312 = vmatpush.msra.mxu0 %v1311
        %v1313 = vand.u32 %v272, 4294901760
        %1314 = vmatpush.msra.mxu0 %v1313
        %v1315 = vand.u32 %v271, 4294901760
        %1316 = vmatpush.msra.mxu0 %v1315
        %v1317 = vand.u32 %v270, 4294901760
        %1318 = vmatpush.msra.mxu0 %v1317
        %v1319 = vand.u32 %v269, 4294901760
        %1320 = vmatpush.msra.mxu0 %v1319
        %v1321 = vand.u32 %v268, 4294901760
        %1322 = vmatpush.msra.mxu0 %v1321
        %v1323 = vand.u32 %v780, 4294901760
        %1324 = vmatmul.f32.gmra.mxu0 %v1323
        %v1325 = vpop.f32.mrf.mxu0
        %v1326 = vadd.f32 %v1258, %v1325
        %v1327 = vand.u32 %v783, 4294901760
        %1328 = vmatmul.f32.gmra.mxu0 %v1327
        %v1329 = vpop.f32.mrf.mxu0
        %v1330 = vadd.f32 %v1262, %v1329
        %v1331 = vand.u32 %v786, 4294901760
        %1332 = vmatmul.f32.gmra.mxu0 %v1331
        %v1333 = vpop.f32.mrf.mxu0
        %v1334 = vadd.f32 %v1266, %v1333
        %v1335 = vand.u32 %v789, 4294901760
        %1336 = vmatmul.f32.gmra.mxu0 %v1335
        %v1337 = vpop.f32.mrf.mxu0
        %v1338 = vadd.f32 %v1270, %v1337
        %v1339 = vand.u32 %v792, 4294901760
        %1340 = vmatmul.f32.gmra.mxu0 %v1339
        %v1341 = vpop.f32.mrf.mxu0
        %v1342 = vadd.f32 %v1274, %v1341
        %v1343 = vand.u32 %v795, 4294901760
        %1344 = vmatmul.f32.gmra.mxu0 %v1343
        %v1345 = vpop.f32.mrf.mxu0
        %v1346 = vadd.f32 %v1278, %v1345
        %v1347 = vand.u32 %v798, 4294901760
        %1348 = vmatmul.f32.gmra.mxu0 %v1347
        %v1349 = vpop.f32.mrf.mxu0
        %v1350 = vadd.f32 %v1282, %v1349
        %v1351 = vand.u32 %v801, 4294901760
        %1352 = vmatmul.f32.gmra.mxu0 %v1351
        %v1353 = vpop.f32.mrf.mxu0
        %v1354 = vadd.f32 %v1286, %v1353
        %v1355 = vand.u32 %v804, 4294901760
        %1356 = vmatmul.f32.gmra.mxu0 %v1355
        %v1357 = vpop.f32.mrf.mxu0
        %v1358 = vadd.f32 %v1290, %v1357
        %v1359 = vand.u32 %v807, 4294901760
        %1360 = vmatmul.f32.gmra.mxu0 %v1359
        %v1361 = vpop.f32.mrf.mxu0
        %v1362 = vadd.f32 %v1294, %v1361
        %1363 = vdwg.mxu0
        %1364 = vst [vmem:[%s257] sm:$0xff] %v1326
        %1365 = vst [vmem:[%s257 + $0x8] sm:$0xff] %v1330
        %1366 = vst [vmem:[%s257 + $0x10] sm:$0xff] %v1334
        %1367 = vst [vmem:[%s257 + $0x18] sm:$0xff] %v1338
        %1368 = vst [vmem:[%s257 + $0x20] sm:$0xff] %v1342
        %1369 = vst [vmem:[%s257 + $0x28] sm:$0xff] %v1346
        %1370 = vst [vmem:[%s257 + $0x30] sm:$0xff] %v1350
        %1371 = vst [vmem:[%s257 + $0x38] sm:$0xff] %v1354
        %1372 = vst [vmem:[%s257 + $0x40] sm:$0xff] %v1358
        %1373 = vst [vmem:[%s257 + $0x48] sm:$0xff] %v1362
        %s1374 = sand.u32 %s126, 1
        %s1375 = scalar_lea.sflag [#allocation4], %s1374
        %s1376 = sand.u32 %s126, 1
        %s1377 = smul.addr %s1376, 80
        %s1378 = scalar_lea.vmem [#allocation7], %s1377
        // Predicated region
        $region45: #{tpu_custom_call.1} parent=35 // pred_check
          %p1379 = pneg %p136
        $region46: #{tpu_custom_call.1} parent=35 // pred_check_branch
          %1381 = sbr.rel (%p1379) target = $region48
        $region47: #{tpu_custom_call.1} parent=35 // pred_region
          %1383 = vsyncadd %s1375, 0
          %s1384 = smul.addr %s24, 8
          %s1385 = scalar_lea.hbm %s4, %s1384
          %s1386 = sshll.u32 %s1378, 4
          %s1387 = int_to_ptr.vmem [resolvable:$true] %s1386
          %s1388 = sshll.u32 %s1385, 4
          %s1389 = int_to_ptr.hbm [resolvable:$true] %s1388
          %1394 = dma.vmem_to_hbm [thread:$0]  %s1387, 1280, %s1389, %s1375, 128, 256, 8
        $region48: #{tpu_custom_call.1} parent=35 // pred_fallthru
          _
      $region36: #{tpu_custom_call.1} parent=5 // pred_fallthru
        _
      %p1395 = scmp.le.s32.totalorder 2, %s19
      // Predicated region
      $region49: #{tpu_custom_call.1} parent=5 // pred_check
        %p1396 = pneg %p1395
      $region50: #{tpu_custom_call.1} parent=5 // pred_check_branch
        %1398 = sbr.rel (%p1396) target = $region52
      $region51: #{tpu_custom_call.1} parent=5 // pred_region
        %s1399 = ssub.s32 %s19, 2
        // Predicated region
        $region53: #{tpu_custom_call.1} parent=51 // pred_check
          %p1400 = pneg %p142
        $region54: #{tpu_custom_call.1} parent=51 // pred_check_branch
          %1402 = sbr.rel (%p1400) target = $region56
        $region55: #{tpu_custom_call.1} parent=51 // pred_region
          %s1403 = sand.u32 %s127, 1
          %s1404 = scalar_lea.sflag [#allocation4], %s1403
          %s1405 = sand.u32 %s127, 1
          %s1406 = smul.addr %s1405, 80
          %s1407 = scalar_lea.vmem [#allocation7], %s1406
          %1409 = dma.done %s1404, 1280
        $region56: #{tpu_custom_call.1} parent=51 // pred_fallthru
          _
      $region52: #{tpu_custom_call.1} parent=5 // pred_fallthru
        _
    $region6: #{tpu_custom_call.1} parent=1 // loop_footer
      %s23 = sadd.s32 1, %s19
    $region7: #{tpu_custom_call.1} parent=1 // loop_footer_branch
      %18 = sbr.rel target = $region3
    $region8: #{tpu_custom_call.1} parent=1 // loop_exit
      _
    %1410 = vsyncpa [#allocation3], 1
    %s1411 = scalar_lea.sflag [#allocation3], 1
    %1412 = vsyncpa %s1411, 1
    %1413 = vsyncpa [#allocation6], 1
    %s1414 = scalar_lea.sflag [#allocation6], 1
    %1415 = vsyncpa %s1414, 1
    %1416 = vsyncpa [#allocation4], 1
    %s1417 = scalar_lea.sflag [#allocation4], 1
    %1418 = vsyncpa %s1417, 1

</llo_original>
